<compile_context>
chip_gen: v7x
topology: tpu7x:2x2x1
jax: 0.10.0
libtpu: 0.0.40
codegen_flags: <defaults>
</compile_context>

<pallas_src>
import jax
import jax.numpy as jnp
from jax.experimental import pallas as pl
from jax.experimental.pallas import tpu as pltpu

IN_FEATURES = 8
OUT_FEATURES = 6
LANE = 128      # TPU lane width
SUBLANE = 8     # TPU sublane width


def _round_up(a: int, m: int) -> int:
    return ((a + m - 1) // m) * m


def linear_forward(x, weight, bias, *, block_b: int = 4096):
    """x: (B, IN) f32, weight: (OUT, IN) f32, bias: (OUT,) f32 -> (B, OUT) f32."""
    B, in_f = x.shape
    out_f = weight.shape[0]
    out_pad = _round_up(out_f, LANE)  # 128

    # Weight pre-transposed once at trace time to (IN, OUT_PAD) = (8, 128):
    # exactly one vreg, MXU feed order.  Padded columns are zero -> contribute 0.
    w_t = jnp.zeros((in_f, out_pad), dtype=weight.dtype).at[:, :out_f].set(weight.T)
    b2 = bias.reshape(1, out_f)  # logical width; added after slicing the accumulator

    # Batch tile: full batch when small (block == full array dim, always legal),
    # otherwise a sublane-aligned tile capped so the grid has >= 2 steps (v7x).
    if B <= block_b:
        tb = B
    else:
        tb = min(block_b, _round_up(pl.cdiv(B, 2), SUBLANE))
    grid = (pl.cdiv(B, tb),)

    def kernel(x_ref, w_ref, b_ref, o_ref):
        # x_ref: (tb, IN), w_ref: (IN, OUT_PAD), b_ref: (1, OUT), o_ref: (tb, OUT)
        acc = jnp.dot(x_ref[...], w_ref[...], preferred_element_type=jnp.float32)
        # Keep the 128-wide accumulator in vregs; store only the logical columns.
        o_ref[...] = (acc[:, :out_f] + b_ref[...]).astype(o_ref.dtype)

    cost = pl.CostEstimate(
        flops=2 * B * in_f * out_f,
        transcendentals=0,
        bytes_accessed=4 * (B * in_f + B * out_f + in_f * out_pad + out_f),
    )

    out = pl.pallas_call(
        kernel,
        out_shape=jax.ShapeDtypeStruct((B, out_f), x.dtype),
        grid=grid,
        in_specs=[
            pl.BlockSpec((tb, in_f), lambda i: (i, 0)),        # x: tile over batch
            pl.BlockSpec((in_f, out_pad), lambda i: (0, 0)),   # weight: VMEM-resident
            pl.BlockSpec((1, out_f), lambda i: (0, 0)),        # bias: VMEM-resident
        ],
        out_specs=pl.BlockSpec((tb, out_f), lambda i: (i, 0)),  # logical-width store
        compiler_params=pltpu.CompilerParams(
            dimension_semantics=("parallel",),
        ),
        cost_estimate=cost,
    )(x, w_t, b2)

    return out


if __name__ == "__main__":
    key = jax.random.PRNGKey(0)
    kx, kw, kb = jax.random.split(key, 3)

    B = 4  # small batch
    x = jax.random.normal(kx, (B, IN_FEATURES), dtype=jnp.float32)

    # Deterministic parameter init (mimicking nn.Linear's uniform(-1/sqrt(in), 1/sqrt(in)))
    bound = 1.0 / (IN_FEATURES ** 0.5)
    weight = jax.random.uniform(
        kw, (OUT_FEATURES, IN_FEATURES), dtype=jnp.float32, minval=-bound, maxval=bound
    )
    bias = jax.random.uniform(
        kb, (OUT_FEATURES,), dtype=jnp.float32, minval=-bound, maxval=bound
    )

    out = linear_forward(x, weight, bias)
    jax.block_until_ready(out)

    # Sanity check vs plain JAX reference
    ref = x @ weight.T + bias
    assert out.shape == (B, OUT_FEATURES)
    assert jnp.allclose(out, ref, atol=1e-5, rtol=1e-5)

    print("KERNEL_OK")
</pallas_src>

<mosaic_0001>
module attributes {stable_mosaic.version = 11 : i64} {
  func.func @kernel(%arg0: i32, %arg1: memref<4x8xf32, #tpu.memory_space<vmem>>, %arg2: memref<8x128xf32, #tpu.memory_space<vmem>>, %arg3: memref<1x6xf32, #tpu.memory_space<vmem>>, %arg4: memref<4x6xf32, #tpu.memory_space<vmem>>) attributes {dimension_semantics = [#tpu.dimension_semantics<parallel>], iteration_bounds = array<i64: 1>, scalar_prefetch = 0 : i64, scratch_operands = 0 : i64, tpu.core_type = #tpu.core_type<tc>, window_params = [{transform_indices = @transform_0, window_bounds = array<i64: 4, 8>}, {pipeline_mode = #tpu.pipeline_mode<synchronous>, transform_indices = @transform_1, window_bounds = array<i64: 8, 128>}, {pipeline_mode = #tpu.pipeline_mode<synchronous>, transform_indices = @transform_2, window_bounds = array<i64: 1, 6>}, {transform_indices = @transform_3, window_bounds = array<i64: 4, 6>}]} {
    %c0 = arith.constant 0 : index
    %c0_0 = arith.constant 0 : index
    %0 = vector.load %arg1[%c0, %c0_0] : memref<4x8xf32, #tpu.memory_space<vmem>>, vector<4x8xf32>
    %c0_1 = arith.constant 0 : index
    %c0_2 = arith.constant 0 : index
    %1 = vector.load %arg2[%c0_1, %c0_2] : memref<8x128xf32, #tpu.memory_space<vmem>>, vector<8x128xf32>
    %cst = arith.constant dense<0.000000e+00> : vector<4x128xf32>
    %2 = tpu.matmul %0, %1, %cst {dimension_numbers = #tpu.dot_dimension_numbers<[1], [0], [0], [1], [0, 0, 1, 1], [], []>} : vector<4x8xf32>, vector<8x128xf32>, vector<4x128xf32> -> vector<4x128xf32>
    %3 = vector.extract_strided_slice %2 {offsets = [0, 0], sizes = [4, 6], strides = [1, 1]} : vector<4x128xf32> to vector<4x6xf32>
    %c0_3 = arith.constant 0 : index
    %c0_4 = arith.constant 0 : index
    %4 = vector.load %arg3[%c0_3, %c0_4] : memref<1x6xf32, #tpu.memory_space<vmem>>, vector<1x6xf32>
    %5 = vector.broadcast %4 : vector<1x6xf32> to vector<4x6xf32>
    %6 = arith.addf %3, %5 : vector<4x6xf32>
    %c0_5 = arith.constant 0 : index
    %c0_6 = arith.constant 0 : index
    %7 = vector.load %arg4[%c0_5, %c0_6] : memref<4x6xf32, #tpu.memory_space<vmem>>, vector<4x6xf32>
    tpu.vector_store %arg4[%c0_5, %c0_6], %6 {strides = array<i32>} : memref<4x6xf32, #tpu.memory_space<vmem>>, vector<4x6xf32>,
    return
  }
  func.func @transform_0(%arg0: i32) -> (i32, i32) {
    %c0_i32 = arith.constant 0 : i32
    %c0_i32_0 = arith.constant 0 : i32
    return %arg0, %c0_i32 : i32, i32
  }
  func.func @transform_1(%arg0: i32) -> (i32, i32) {
    %c0_i32 = arith.constant 0 : i32
    %c0_i32_0 = arith.constant 0 : i32
    %c0_i32_1 = arith.constant 0 : i32
    return %c0_i32, %c0_i32_0 : i32, i32
  }
  func.func @transform_2(%arg0: i32) -> (i32, i32) {
    %c0_i32 = arith.constant 0 : i32
    %c0_i32_0 = arith.constant 0 : i32
    %c0_i32_1 = arith.constant 0 : i32
    return %c0_i32, %c0_i32_0 : i32, i32
  }
  func.func @transform_3(%arg0: i32) -> (i32, i32) {
    %c0_i32 = arith.constant 0 : i32
    %c0_i32_0 = arith.constant 0 : i32
    return %arg0, %c0_i32 : i32, i32
  }
}

</mosaic_0001>

<llo_original>
// kernel: tpu_custom_call.1
$region0: #{tpu_custom_call.1}
  #allocation0 [shape = 'u32[]', space=smem, size = 0x4, offset = 0x4, fixed_abs, tag = 'smem constant byte address 0x4 - core index']
  #allocation1 [shape = 'u32[144,128]{1,0:T(1,128)}', space=vmem, size = 0x12000, scoped, tag = 'internal scratch']
  %s0 = inlined_call_operand.hbm [shape: f32[4,8], index: 0, kind: input, shape index: {}]
  %s1 = inlined_call_operand.hbm [shape: f32[8,128], index: 1, kind: input, shape index: {}]
  %s2 = inlined_call_operand.vmem [shape: f32[1,6], index: 2, kind: input, shape index: {}]
  %s3 = inlined_call_operand.hbm [shape: f32[4,6], index: 3, kind: output, shape index: {}]
  %s4 = sld [smem:[#allocation0]]
  $region30: #{tpu_custom_call.1} parent=0
    _
  %s6 = ssub.s32 1, %s4
  %s7 = scalar_select 0, %s6, %s4
  $region1: #{tpu_custom_call.1} parent=0
    #allocation2 [shape = 'u8[2048]{0}', space=vmem, size = 0x800, scoped, tag = 'input window, operand 0, single buffered']
    #allocation3 [shape = 's32[1]{0}', space=sflag, size = 0x4, scoped, tag = 'scoped memory for tpu_custom_call.1']
    #allocation4 [shape = 's32[1]{0}', space=sflag, size = 0x4, scoped, tag = 'scoped memory for tpu_custom_call.1']
    #allocation5 [shape = 'u8[4096]{0}', space=vmem, size = 0x1000, scoped, tag = 'input window, operand 1, single buffered']
    #allocation6 [shape = 's32[1]{0}', space=sflag, size = 0x4, scoped, tag = 'scoped memory for tpu_custom_call.1']
    #allocation7 [shape = 'u8[2048]{0}', space=vmem, size = 0x800, scoped, tag = 'output window, operand 0, single buffered']
    %8 = vsyncpa [#allocation3], 0
    %9 = vsyncpa [#allocation6], 0
    %10 = vsyncpa [#allocation4], 0
    // Predicated region
    $region2: #{tpu_custom_call.1} parent=1 // pred_check
      _
    $region3: #{tpu_custom_call.1} parent=1 // pred_check_branch
      %12 = sbr.rel (0) target = $region5
    $region4: #{tpu_custom_call.1} parent=1 // pred_region
      %s14 = ssub.s32 64, 64
      %15 = vsyncadd [#allocation3], %s14
      %s17 = sshll.u32 [#allocation2], 4
      %s18 = int_to_ptr.vmem [resolvable:$true] %s17
      %20 = dma.hbm_to_vmem [thread:$0]  %s0, 64, %s18, [#allocation3]
    $region5: #{tpu_custom_call.1} parent=1 // pred_fallthru
      _
    // Predicated region
    $region6: #{tpu_custom_call.1} parent=1 // pred_check
      _
    $region7: #{tpu_custom_call.1} parent=1 // pred_check_branch
      %22 = sbr.rel (0) target = $region9
    $region8: #{tpu_custom_call.1} parent=1 // pred_region
      %s24 = ssub.s32 128, 128
      %25 = vsyncadd [#allocation6], %s24
      %s27 = sshll.u32 [#allocation5], 4
      %s28 = int_to_ptr.vmem [resolvable:$true] %s27
      %30 = dma.hbm_to_vmem [thread:$0]  %s1, 128, %s28, [#allocation6]
    $region9: #{tpu_custom_call.1} parent=1 // pred_fallthru
      _
    // Predicated region
    $region10: #{tpu_custom_call.1} parent=1 // pred_check
      _
    $region11: #{tpu_custom_call.1} parent=1 // pred_check_branch
      %32 = sbr.rel (0) target = $region13
    $region12: #{tpu_custom_call.1} parent=1 // pred_region
      _
    $region13: #{tpu_custom_call.1} parent=1 // pred_fallthru
      _
    // Predicated region
    $region14: #{tpu_custom_call.1} parent=1 // pred_check
      _
    $region15: #{tpu_custom_call.1} parent=1 // pred_check_branch
      %34 = sbr.rel (0) target = $region17
    $region16: #{tpu_custom_call.1} parent=1 // pred_region
      %35 = dma.done [#allocation3], 64
    $region17: #{tpu_custom_call.1} parent=1 // pred_fallthru
      _
    // Predicated region
    $region18: #{tpu_custom_call.1} parent=1 // pred_check
      _
    $region19: #{tpu_custom_call.1} parent=1 // pred_check_branch
      %37 = sbr.rel (0) target = $region21
    $region20: #{tpu_custom_call.1} parent=1 // pred_region
      %38 = dma.done [#allocation6], 128
    $region21: #{tpu_custom_call.1} parent=1 // pred_fallthru
      _
    %v39 = vld [vmem:[#allocation2] sm:$0xf]
    %v40 = vld [vmem:[#allocation5] sm:$0xff]
    %vm41 = vcmask 64512
    %v43 = vsel %vm41, %v39, 0
    %45 = vmatprep.subr.mxu0 0.0
    %46 = vmatpush1.msra.mxu0 %v40
    %47 = vmatprep.subr.mxu0 0.0
    %48 = vmatpush1.msra.mxu0 0.0
    %49 = vmatprep.subr.mxu0 0.0
    %50 = vmatpush1.msra.mxu0 0.0
    %51 = vmatprep.subr.mxu0 0.0
    %52 = vmatpush1.msra.mxu0 0.0
    %53 = vmatprep.subr.mxu0 0.0
    %54 = vmatpush1.msra.mxu0 0.0
    %55 = vmatprep.subr.mxu0 0.0
    %56 = vmatpush1.msra.mxu0 0.0
    %57 = vmatprep.subr.mxu0 0.0
    %58 = vmatpush1.msra.mxu0 0.0
    %59 = vmatprep.subr.mxu0 0.0
    %60 = vmatpush1.msra.mxu0 0.0
    %61 = vmatprep.subr.mxu0 0.0
    %62 = vmatpush1.msra.mxu0 0.0
    %63 = vmatprep.subr.mxu0 0.0
    %64 = vmatpush1.msra.mxu0 0.0
    %65 = vmatprep.subr.mxu0 0.0
    %66 = vmatpush1.msra.mxu0 0.0
    %67 = vmatprep.subr.mxu0 0.0
    %68 = vmatpush1.msra.mxu0 0.0
    %69 = vmatprep.subr.mxu0 0.0
    %70 = vmatpush1.msra.mxu0 0.0
    %71 = vmatprep.subr.mxu0 0.0
    %72 = vmatpush1.msra.mxu0 0.0
    %73 = vmatprep.subr.mxu0 0.0
    %74 = vmatpush1.msra.mxu0 0.0
    %75 = vmatprep.subr.mxu0 0.0
    %76 = vmatpush1.msra.mxu0 0.0
    %77 = vmatprep.subr.mxu0 0.0
    %78 = vmatpush1.msra.mxu0 0.0
    %79 = vmatprep.subr.mxu0 0.0
    %80 = vmatpush1.msra.mxu0 0.0
    %81 = vmatprep.subr.mxu0 0.0
    %82 = vmatpush1.msra.mxu0 0.0
    %83 = vmatprep.subr.mxu0 0.0
    %84 = vmatpush1.msra.mxu0 0.0
    %85 = vmatprep.subr.mxu0 0.0
    %86 = vmatpush1.msra.mxu0 0.0
    %87 = vmatprep.subr.mxu0 0.0
    %88 = vmatpush1.msra.mxu0 0.0
    %89 = vmatprep.subr.mxu0 0.0
    %90 = vmatpush1.msra.mxu0 0.0
    %91 = vmatprep.subr.mxu0 0.0
    %92 = vmatpush1.msra.mxu0 0.0
    %93 = vmatprep.subr.mxu0 0.0
    %94 = vmatpush1.msra.mxu0 0.0
    %95 = vmatprep.subr.mxu0 0.0
    %96 = vmatpush1.msra.mxu0 0.0
    %97 = vmatprep.subr.mxu0 0.0
    %98 = vmatpush1.msra.mxu0 0.0
    %99 = vmatprep.subr.mxu0 0.0
    %100 = vmatpush1.msra.mxu0 0.0
    %101 = vmatprep.subr.mxu0 0.0
    %102 = vmatpush1.msra.mxu0 0.0
    %103 = vmatprep.subr.mxu0 0.0
    %104 = vmatpush1.msra.mxu0 0.0
    %105 = vmatprep.subr.mxu0 0.0
    %106 = vmatpush1.msra.mxu0 0.0
    %107 = vmatprep.subr.mxu0 0.0
    %108 = vmatpush1.msra.mxu0 0.0
    %109 = vmatprep.mubr.f32.mxu0 0.0
    %110 = vmatmul.mubr.f32.gmra.mrb[0].mxu0 %v43
    %v111 = vpop.f32.mrb[0].mxu0
    %v112 = vadd.f32 0.0, %v111
    %v113 = vpop.f32.mrb[0].mxu0
    %114 = vdwg.mxu0
    %v115 = vld [vmem:[%s2] sm:$0x1]
    %v117 = vlaneseq
    %v118 = vshrl.u32 %v117, 7
    %v119 = vsub.s32 0, %v118
    %v120 = vrot.slane %v115, %v119
    %v122 = vadd.f32 %v112, %v120
    %vm123 = vcmask 44032
    %124 = vst.msk [vmem:[#allocation7] sm:$0xf] %vm123, %v122
    // Predicated region
    $region22: #{tpu_custom_call.1} parent=1 // pred_check
      _
    $region23: #{tpu_custom_call.1} parent=1 // pred_check_branch
      %126 = sbr.rel (0) target = $region25
    $region24: #{tpu_custom_call.1} parent=1 // pred_region
      %s128 = ssub.s32 64, 64
      %129 = vsyncadd [#allocation4], %s128
      %s131 = sshll.u32 [#allocation7], 4
      %s132 = int_to_ptr.vmem [resolvable:$true] %s131
      %134 = dma.vmem_to_hbm [thread:$0]  %s132, 64, %s3, [#allocation4]
    $region25: #{tpu_custom_call.1} parent=1 // pred_fallthru
      _
    // Predicated region
    $region26: #{tpu_custom_call.1} parent=1 // pred_check
      _
    $region27: #{tpu_custom_call.1} parent=1 // pred_check_branch
      %136 = sbr.rel (0) target = $region29
    $region28: #{tpu_custom_call.1} parent=1 // pred_region
      %137 = dma.done [#allocation4], 64
    $region29: #{tpu_custom_call.1} parent=1 // pred_fallthru
      _
    %138 = vsyncpa [#allocation3], 1
    %139 = vsyncpa [#allocation6], 1
    %140 = vsyncpa [#allocation4], 1

</llo_original>
